<compile_context>
chip_gen: v5e
topology: v5e:2x2
jax: 0.10.0
libtpu: 0.0.40
codegen_flags: <defaults>
</compile_context>

<pallas_src>
import functools

import jax
import jax.numpy as jnp
from jax.experimental import pallas as pl
from jax.experimental.pallas import tpu as pltpu


# ---------------------------------------------------------------------------
# Pallas kernel
# ---------------------------------------------------------------------------

def item_encoder_kernel(idx_ref, w_ref, tbl_ref, o_ref, *, tv, m_slots):
    """Weighted bag-sum of embedding rows for one (bag-tile, vocab-tile) grid cell.

    idx_ref : [TB, M]  int32   global vocab indices (all attributes fused, padded)
    w_ref   : [TB, M]  f32     per-slot weight (1/bag_size for real slots, 0 for pad)
    tbl_ref : [TV, Dp] bf16    one vocab tile of the fused embedding table
    o_ref   : [TB, Dp] f32     output block (resident across the vocab axis; accumulator)
    """
    j = pl.program_id(1)

    idx = idx_ref[...]                       # [TB, M] int32
    w = w_ref[...]                           # [TB, M] f32
    tb = idx.shape[0]

    # Absolute vocab id of each lane in this vocab tile.
    lane = jax.lax.broadcasted_iota(jnp.int32, (tb, tv), 1) + j * tv

    # Weighted scatter matrix onehot[b, v] = sum_m w[b,m] * (idx[b,m] == v), built in
    # vregs (never touches HBM).  Compare/select math kept in f32/int32 (no bf16 VPU on
    # v5e); only the MXU operand is cast to bf16.
    onehot = jnp.zeros((tb, tv), jnp.float32)
    for m in range(m_slots):
        onehot = onehot + jnp.where(lane == idx[:, m:m + 1], w[:, m:m + 1], 0.0)

    # Native bf16 MXU matmul against the streamed/resident table tile, f32 accumulation.
    partial = jnp.dot(onehot.astype(tbl_ref.dtype), tbl_ref[...],
                      preferred_element_type=jnp.float32)

    @pl.when(j == 0)
    def _first():
        o_ref[...] = partial

    @pl.when(j > 0)
    def _accum():
        o_ref[...] = o_ref[...] + partial


# ---------------------------------------------------------------------------
# pallas_call wrapper
# ---------------------------------------------------------------------------

def _round_up(x, m):
    return (x + m - 1) // m * m


def pallas_item_encoder(idx_all, w_all, params, *, tb_max=256):
    """idx_all/w_all: [B, M]; params from prepare_item_encoder_params. Returns [B, D] f32."""
    B, M = idx_all.shape
    table = params["table"]                  # [Vp, Dp] bf16, prepared once at init
    Vp, Dp = table.shape
    tv = params["tv"]
    D = params["D"]

    # Large bag tile (MXU-shaped, cuts table re-streaming), but never bigger than needed.
    tb = min(tb_max, _round_up(B, 8))
    tb = _round_up(tb, 8)
    Bp = _round_up(B, tb)

    idx_p = jnp.zeros((Bp, M), jnp.int32).at[:B].set(idx_all.astype(jnp.int32))
    w_p = jnp.zeros((Bp, M), jnp.float32).at[:B].set(w_all.astype(jnp.float32))

    grid = (Bp // tb, Vp // tv)

    # VMEM budget: table double buffer + output double buffer + idx/w + one-hot temps.
    tbl_bytes = 2 if table.dtype == jnp.bfloat16 else 4
    vmem_need = (2 * tv * Dp * tbl_bytes
                 + 2 * tb * Dp * 4
                 + 2 * tb * M * 8
                 + tb * tv * (4 + tbl_bytes))
    # Cap at 48 MiB so the same tiling is safe under v7x's 64 MiB physical VMEM.
    vmem_limit = min(max(int(vmem_need * 2), 32 << 20), 48 << 20)

    kern = functools.partial(item_encoder_kernel, tv=tv, m_slots=M)

    out = pl.pallas_call(
        kern,
        out_shape=jax.ShapeDtypeStruct((Bp, Dp), jnp.float32),
        grid_spec=pltpu.PrefetchScalarGridSpec(
            num_scalar_prefetch=0,
            grid=grid,
            in_specs=[
                pl.BlockSpec((tb, M), lambda i, j: (i, 0)),    # indices (per bag tile)
                pl.BlockSpec((tb, M), lambda i, j: (i, 0)),    # weights (per bag tile)
                pl.BlockSpec((tv, Dp), lambda i, j: (j, 0)),   # table tile (resident if tv==Vp)
            ],
            out_specs=pl.BlockSpec((tb, Dp), lambda i, j: (i, 0)),
        ),
        compiler_params=pltpu.CompilerParams(
            dimension_semantics=("parallel", "arbitrary"),
            vmem_limit_bytes=vmem_limit),
    )(idx_p, w_p, table)

    return out[:B, :D]


# ---------------------------------------------------------------------------
# One-time parameter preparation (hoisted out of the forward path)
# ---------------------------------------------------------------------------

def prepare_item_encoder_params(tables, *, lane=128, tv_cap=2048,
                                table_dtype=jnp.bfloat16):
    """Fuse all attribute embedding tables into one padded table (done once at init).

    tables: {attr_name: [V_a, emb_dim] float array}
    Returns a dict with the fused bf16 table, per-attribute vocab offsets and tiling meta.
    """
    names = tuple(tables.keys())
    D = int(tables[names[0]].shape[1])
    Dp = _round_up(D, lane)                  # lane-dense output / full MXU width

    vocab_offsets, parts, off = {}, [], 0
    for name in names:
        t = jnp.asarray(tables[name], jnp.float32)
        vocab_offsets[name] = off
        off += int(t.shape[0])
        parts.append(t)
    V = off

    tv = min(_round_up(max(V, 1), 128), tv_cap)  # single resident tile when vocab is small
    Vp = _round_up(max(V, 1), tv)

    fused = jnp.zeros((Vp, Dp), jnp.float32)
    if V > 0:
        fused = fused.at[:V, :D].set(jnp.concatenate(parts, axis=0))
    fused = fused.astype(table_dtype)

    return dict(table=fused, vocab_offsets=vocab_offsets, names=names,
                D=D, Dp=Dp, V=V, Vp=Vp, tv=tv)


# ---------------------------------------------------------------------------
# ItemEncoder glue: ragged EmbeddingBag inputs -> fixed-shape fused kernel inputs
# ---------------------------------------------------------------------------

def _pad_bags(item_attr, offsets, max_bag):
    """Flat EmbeddingBag (input, offsets) -> padded [B, max_bag] (indices, weights)."""
    item_attr = jnp.asarray(item_attr, jnp.int32)
    offsets = jnp.asarray(offsets, jnp.int32)
    B = offsets.shape[0]
    L = item_attr.shape[0]
    if L == 0:
        # All bags empty -> EmbeddingBag(mean) produces zeros (avoid OOB gather on []).
        return (jnp.zeros((B, max_bag), jnp.int32),
                jnp.zeros((B, max_bag), jnp.float32))
    ends = jnp.concatenate([offsets[1:], jnp.array([L], jnp.int32)])
    sizes = ends - offsets                                            # [B]
    slot = jnp.arange(max_bag, dtype=jnp.int32)[None, :]              # [1, max_bag]
    valid = slot < sizes[:, None]
    pos = jnp.clip(offsets[:, None] + slot, 0, L - 1)
    idx = jnp.where(valid, item_attr[pos], 0)
    w = jnp.where(valid,
                  1.0 / jnp.maximum(sizes, 1)[:, None].astype(jnp.float32),
                  0.0)
    return idx, w


def _compact_slots(idx_all, w_all):
    """Move valid slots to the left and (when concrete) trim M to the true occupancy."""
    valid = w_all > 0.0
    key = jnp.logical_not(valid).astype(jnp.int32)
    order = jnp.argsort(key, axis=1)                    # valid slots first
    idx_c = jnp.take_along_axis(idx_all, order, axis=1)
    w_c = jnp.take_along_axis(w_all, order, axis=1)
    try:
        occ = max(int(jnp.max(jnp.sum(valid, axis=1))), 1)
        idx_c = idx_c[:, :occ]
        w_c = w_c[:, :occ]
    except (jax.errors.ConcretizationTypeError, TypeError):
        pass                                            # traced: keep static M
    return idx_c, w_c


def item_encoder_forward(item_attr_pair_dict, params, *, max_bag, tb_max=256):
    """Pallas implementation of ItemEncoder.forward.

    item_attr_pair_dict: {attr_name: (item_attr [L_a] int, item_attr_offset [B] int)}
    params:              output of prepare_item_encoder_params (fixes attribute order).
    """
    idx_parts, w_parts = [], []
    for name in params["names"]:                        # ordering from params, not caller
        item_attr, offsets = item_attr_pair_dict[name]
        idx, w = _pad_bags(item_attr, offsets, max_bag)
        idx_parts.append(idx + params["vocab_offsets"][name])
        w_parts.append(w)
    idx_all = jnp.concatenate(idx_parts, axis=1)        # [B, n_attr * max_bag]
    w_all = jnp.concatenate(w_parts, axis=1)
    idx_all, w_all = _compact_slots(idx_all, w_all)     # shrink M (VALU-bound one-hot)
    return pallas_item_encoder(idx_all, w_all, params, tb_max=tb_max)


# ---------------------------------------------------------------------------
# Pure-JAX reference (PyTorch EmbeddingBag mean semantics) for self-check
# ---------------------------------------------------------------------------

def reference_item_encoder(item_attr_pair_dict, tables):
    out = 0.0
    for name, (item_attr, offsets) in item_attr_pair_dict.items():
        tbl = jnp.asarray(tables[name], jnp.float32)
        item_attr = jnp.asarray(item_attr, jnp.int32)
        offsets = jnp.asarray(offsets, jnp.int32)
        L = item_attr.shape[0]
        B = offsets.shape[0]
        ends = jnp.concatenate([offsets[1:], jnp.array([L], jnp.int32)])
        sizes = ends - offsets
        bag_of = jnp.searchsorted(offsets, jnp.arange(L), side="right") - 1
        summed = jnp.zeros((B, tbl.shape[1]), jnp.float32).at[bag_of].add(tbl[item_attr])
        out = out + summed / jnp.maximum(sizes, 1)[:, None].astype(jnp.float32)
    return out


# ---------------------------------------------------------------------------
# Demo
# ---------------------------------------------------------------------------

if __name__ == "__main__":
    num_items = 16            # number of bags (batch of items)
    emb_dim = 64              # padded to 128 lanes inside the kernel wrapper
    max_bag = 6               # static upper bound on attrs-per-item per attribute
    vocab_sizes = {"category": 40, "brand": 24, "tag": 200}

    key = jax.random.PRNGKey(0)

    # Embedding tables (one per attribute), like nn.EmbeddingBag weights.
    tables = {}
    for name, vocab in vocab_sizes.items():
        key, k = jax.random.split(key)
        tables[name] = jax.random.normal(k, (vocab, emb_dim), jnp.float32)

    # One-time prep: fused, padded, bf16 table + vocab offsets (not in the forward path).
    params = prepare_item_encoder_params(tables)

    # Ragged (item_attr, item_attr_offset) inputs, exactly the PyTorch forward input.
    item_attr_pair_dict = {}
    for name, vocab in vocab_sizes.items():
        key, k_sz, k_ix = jax.random.split(key, 3)
        sizes = jax.random.randint(k_sz, (num_items,), 1, max_bag + 1)
        offsets = jnp.concatenate(
            [jnp.zeros((1,), jnp.int32), jnp.cumsum(sizes)[:-1].astype(jnp.int32)])
        total = int(jnp.sum(sizes))
        flat_idx = jax.random.randint(k_ix, (total,), 0, vocab)
        item_attr_pair_dict[name] = (flat_idx, offsets)

    # Pallas path.
    emb = item_encoder_forward(item_attr_pair_dict, params, max_bag=max_bag)
    emb = jax.block_until_ready(emb)

    # Reference path (f32).  Tolerance loosened because the fused table (and the MXU
    # one-hot operand) are bf16; accumulation is f32.
    ref = reference_item_encoder(item_attr_pair_dict, tables)

    assert emb.shape == (num_items, emb_dim), emb.shape
    assert jnp.allclose(emb, ref, atol=3e-2, rtol=3e-2), (
        float(jnp.max(jnp.abs(emb - ref))))

    print("KERNEL_OK")
</pallas_src>

<mosaic_0001>
module attributes {stable_mosaic.version = 11 : i64} {
  func.func @item_encoder_kernel(%arg0: i32, %arg1: i32, %arg2: memref<16x16xi32, #tpu.memory_space<vmem>>, %arg3: memref<16x16xf32, #tpu.memory_space<vmem>>, %arg4: memref<384x128xbf16, #tpu.memory_space<vmem>>, %arg5: memref<16x128xf32, #tpu.memory_space<vmem>>) attributes {dimension_semantics = [#tpu.dimension_semantics<parallel>, #tpu.dimension_semantics<arbitrary>], iteration_bounds = array<i64: 1, 1>, scalar_prefetch = 0 : i64, scratch_operands = 0 : i64, tpu.core_type = #tpu.core_type<tc>, window_params = [{transform_indices = @transform_0, window_bounds = array<i64: 16, 16>}, {transform_indices = @transform_1, window_bounds = array<i64: 16, 16>}, {transform_indices = @transform_2, window_bounds = array<i64: 384, 128>}, {transform_indices = @transform_3, window_bounds = array<i64: 16, 128>}]} {
    %c0 = arith.constant 0 : index
    %c0_0 = arith.constant 0 : index
    %0 = vector.load %arg2[%c0, %c0_0] : memref<16x16xi32, #tpu.memory_space<vmem>>, vector<16x16xi32>
    %c0_1 = arith.constant 0 : index
    %c0_2 = arith.constant 0 : index
    %1 = vector.load %arg3[%c0_1, %c0_2] : memref<16x16xf32, #tpu.memory_space<vmem>>, vector<16x16xf32>
    %2 = tpu.iota {dimensions = array<i32: 1>} : vector<16x384xi32>
    %c384_i32 = arith.constant 384 : i32
    %3 = arith.muli %arg1, %c384_i32 : i32
    %4 = vector.broadcast %3 : i32 to vector<16x384xi32>
    %5 = arith.addi %2, %4 : vector<16x384xi32>
    %cst = arith.constant 0.000000e+00 : f32
    %6 = vector.broadcast %cst : f32 to vector<16x384xf32>
    %7 = vector.extract_strided_slice %0 {offsets = [0, 0], sizes = [16, 1], strides = [1, 1]} : vector<16x16xi32> to vector<16x1xi32>
    %8 = vector.broadcast %7 : vector<16x1xi32> to vector<16x384xi32>
    %9 = arith.cmpi eq, %5, %8 : vector<16x384xi32>
    %10 = vector.extract_strided_slice %1 {offsets = [0, 0], sizes = [16, 1], strides = [1, 1]} : vector<16x16xf32> to vector<16x1xf32>
    %cst_3 = arith.constant 0.000000e+00 : f32
    %11 = vector.shape_cast %10 : vector<16x1xf32> to vector<16x1xf32>
    %12 = vector.broadcast %11 : vector<16x1xf32> to vector<16x384xf32>
    %13 = vector.broadcast %cst_3 : f32 to vector<16x384xf32>
    %14 = arith.select %9, %12, %13 : vector<16x384xi1>, vector<16x384xf32>
    %15 = arith.addf %6, %14 : vector<16x384xf32>
    %16 = vector.extract_strided_slice %0 {offsets = [0, 1], sizes = [16, 1], strides = [1, 1]} : vector<16x16xi32> to vector<16x1xi32>
    %17 = vector.broadcast %16 : vector<16x1xi32> to vector<16x384xi32>
    %18 = arith.cmpi eq, %5, %17 : vector<16x384xi32>
    %19 = vector.extract_strided_slice %1 {offsets = [0, 1], sizes = [16, 1], strides = [1, 1]} : vector<16x16xf32> to vector<16x1xf32>
    %cst_4 = arith.constant 0.000000e+00 : f32
    %20 = vector.shape_cast %19 : vector<16x1xf32> to vector<16x1xf32>
    %21 = vector.broadcast %20 : vector<16x1xf32> to vector<16x384xf32>
    %22 = vector.broadcast %cst_4 : f32 to vector<16x384xf32>
    %23 = arith.select %18, %21, %22 : vector<16x384xi1>, vector<16x384xf32>
    %24 = arith.addf %15, %23 : vector<16x384xf32>
    %25 = vector.extract_strided_slice %0 {offsets = [0, 2], sizes = [16, 1], strides = [1, 1]} : vector<16x16xi32> to vector<16x1xi32>
    %26 = vector.broadcast %25 : vector<16x1xi32> to vector<16x384xi32>
    %27 = arith.cmpi eq, %5, %26 : vector<16x384xi32>
    %28 = vector.extract_strided_slice %1 {offsets = [0, 2], sizes = [16, 1], strides = [1, 1]} : vector<16x16xf32> to vector<16x1xf32>
    %cst_5 = arith.constant 0.000000e+00 : f32
    %29 = vector.shape_cast %28 : vector<16x1xf32> to vector<16x1xf32>
    %30 = vector.broadcast %29 : vector<16x1xf32> to vector<16x384xf32>
    %31 = vector.broadcast %cst_5 : f32 to vector<16x384xf32>
    %32 = arith.select %27, %30, %31 : vector<16x384xi1>, vector<16x384xf32>
    %33 = arith.addf %24, %32 : vector<16x384xf32>
    %34 = vector.extract_strided_slice %0 {offsets = [0, 3], sizes = [16, 1], strides = [1, 1]} : vector<16x16xi32> to vector<16x1xi32>
    %35 = vector.broadcast %34 : vector<16x1xi32> to vector<16x384xi32>
    %36 = arith.cmpi eq, %5, %35 : vector<16x384xi32>
    %37 = vector.extract_strided_slice %1 {offsets = [0, 3], sizes = [16, 1], strides = [1, 1]} : vector<16x16xf32> to vector<16x1xf32>
    %cst_6 = arith.constant 0.000000e+00 : f32
    %38 = vector.shape_cast %37 : vector<16x1xf32> to vector<16x1xf32>
    %39 = vector.broadcast %38 : vector<16x1xf32> to vector<16x384xf32>
    %40 = vector.broadcast %cst_6 : f32 to vector<16x384xf32>
    %41 = arith.select %36, %39, %40 : vector<16x384xi1>, vector<16x384xf32>
    %42 = arith.addf %33, %41 : vector<16x384xf32>
    %43 = vector.extract_strided_slice %0 {offsets = [0, 4], sizes = [16, 1], strides = [1, 1]} : vector<16x16xi32> to vector<16x1xi32>
    %44 = vector.broadcast %43 : vector<16x1xi32> to vector<16x384xi32>
    %45 = arith.cmpi eq, %5, %44 : vector<16x384xi32>
    %46 = vector.extract_strided_slice %1 {offsets = [0, 4], sizes = [16, 1], strides = [1, 1]} : vector<16x16xf32> to vector<16x1xf32>
    %cst_7 = arith.constant 0.000000e+00 : f32
    %47 = vector.shape_cast %46 : vector<16x1xf32> to vector<16x1xf32>
    %48 = vector.broadcast %47 : vector<16x1xf32> to vector<16x384xf32>
    %49 = vector.broadcast %cst_7 : f32 to vector<16x384xf32>
    %50 = arith.select %45, %48, %49 : vector<16x384xi1>, vector<16x384xf32>
    %51 = arith.addf %42, %50 : vector<16x384xf32>
    %52 = vector.extract_strided_slice %0 {offsets = [0, 5], sizes = [16, 1], strides = [1, 1]} : vector<16x16xi32> to vector<16x1xi32>
    %53 = vector.broadcast %52 : vector<16x1xi32> to vector<16x384xi32>
    %54 = arith.cmpi eq, %5, %53 : vector<16x384xi32>
    %55 = vector.extract_strided_slice %1 {offsets = [0, 5], sizes = [16, 1], strides = [1, 1]} : vector<16x16xf32> to vector<16x1xf32>
    %cst_8 = arith.constant 0.000000e+00 : f32
    %56 = vector.shape_cast %55 : vector<16x1xf32> to vector<16x1xf32>
    %57 = vector.broadcast %56 : vector<16x1xf32> to vector<16x384xf32>
    %58 = vector.broadcast %cst_8 : f32 to vector<16x384xf32>
    %59 = arith.select %54, %57, %58 : vector<16x384xi1>, vector<16x384xf32>
    %60 = arith.addf %51, %59 : vector<16x384xf32>
    %61 = vector.extract_strided_slice %0 {offsets = [0, 6], sizes = [16, 1], strides = [1, 1]} : vector<16x16xi32> to vector<16x1xi32>
    %62 = vector.broadcast %61 : vector<16x1xi32> to vector<16x384xi32>
    %63 = arith.cmpi eq, %5, %62 : vector<16x384xi32>
    %64 = vector.extract_strided_slice %1 {offsets = [0, 6], sizes = [16, 1], strides = [1, 1]} : vector<16x16xf32> to vector<16x1xf32>
    %cst_9 = arith.constant 0.000000e+00 : f32
    %65 = vector.shape_cast %64 : vector<16x1xf32> to vector<16x1xf32>
    %66 = vector.broadcast %65 : vector<16x1xf32> to vector<16x384xf32>
    %67 = vector.broadcast %cst_9 : f32 to vector<16x384xf32>
    %68 = arith.select %63, %66, %67 : vector<16x384xi1>, vector<16x384xf32>
    %69 = arith.addf %60, %68 : vector<16x384xf32>
    %70 = vector.extract_strided_slice %0 {offsets = [0, 7], sizes = [16, 1], strides = [1, 1]} : vector<16x16xi32> to vector<16x1xi32>
    %71 = vector.broadcast %70 : vector<16x1xi32> to vector<16x384xi32>
    %72 = arith.cmpi eq, %5, %71 : vector<16x384xi32>
    %73 = vector.extract_strided_slice %1 {offsets = [0, 7], sizes = [16, 1], strides = [1, 1]} : vector<16x16xf32> to vector<16x1xf32>
    %cst_10 = arith.constant 0.000000e+00 : f32
    %74 = vector.shape_cast %73 : vector<16x1xf32> to vector<16x1xf32>
    %75 = vector.broadcast %74 : vector<16x1xf32> to vector<16x384xf32>
    %76 = vector.broadcast %cst_10 : f32 to vector<16x384xf32>
    %77 = arith.select %72, %75, %76 : vector<16x384xi1>, vector<16x384xf32>
    %78 = arith.addf %69, %77 : vector<16x384xf32>
    %79 = vector.extract_strided_slice %0 {offsets = [0, 8], sizes = [16, 1], strides = [1, 1]} : vector<16x16xi32> to vector<16x1xi32>
    %80 = vector.broadcast %79 : vector<16x1xi32> to vector<16x384xi32>
    %81 = arith.cmpi eq, %5, %80 : vector<16x384xi32>
    %82 = vector.extract_strided_slice %1 {offsets = [0, 8], sizes = [16, 1], strides = [1, 1]} : vector<16x16xf32> to vector<16x1xf32>
    %cst_11 = arith.constant 0.000000e+00 : f32
    %83 = vector.shape_cast %82 : vector<16x1xf32> to vector<16x1xf32>
    %84 = vector.broadcast %83 : vector<16x1xf32> to vector<16x384xf32>
    %85 = vector.broadcast %cst_11 : f32 to vector<16x384xf32>
    %86 = arith.select %81, %84, %85 : vector<16x384xi1>, vector<16x384xf32>
    %87 = arith.addf %78, %86 : vector<16x384xf32>
    %88 = vector.extract_strided_slice %0 {offsets = [0, 9], sizes = [16, 1], strides = [1, 1]} : vector<16x16xi32> to vector<16x1xi32>
    %89 = vector.broadcast %88 : vector<16x1xi32> to vector<16x384xi32>
    %90 = arith.cmpi eq, %5, %89 : vector<16x384xi32>
    %91 = vector.extract_strided_slice %1 {offsets = [0, 9], sizes = [16, 1], strides = [1, 1]} : vector<16x16xf32> to vector<16x1xf32>
    %cst_12 = arith.constant 0.000000e+00 : f32
    %92 = vector.shape_cast %91 : vector<16x1xf32> to vector<16x1xf32>
    %93 = vector.broadcast %92 : vector<16x1xf32> to vector<16x384xf32>
    %94 = vector.broadcast %cst_12 : f32 to vector<16x384xf32>
    %95 = arith.select %90, %93, %94 : vector<16x384xi1>, vector<16x384xf32>
    %96 = arith.addf %87, %95 : vector<16x384xf32>
    %97 = vector.extract_strided_slice %0 {offsets = [0, 10], sizes = [16, 1], strides = [1, 1]} : vector<16x16xi32> to vector<16x1xi32>
    %98 = vector.broadcast %97 : vector<16x1xi32> to vector<16x384xi32>
    %99 = arith.cmpi eq, %5, %98 : vector<16x384xi32>
    %100 = vector.extract_strided_slice %1 {offsets = [0, 10], sizes = [16, 1], strides = [1, 1]} : vector<16x16xf32> to vector<16x1xf32>
    %cst_13 = arith.constant 0.000000e+00 : f32
    %101 = vector.shape_cast %100 : vector<16x1xf32> to vector<16x1xf32>
    %102 = vector.broadcast %101 : vector<16x1xf32> to vector<16x384xf32>
    %103 = vector.broadcast %cst_13 : f32 to vector<16x384xf32>
    %104 = arith.select %99, %102, %103 : vector<16x384xi1>, vector<16x384xf32>
    %105 = arith.addf %96, %104 : vector<16x384xf32>
    %106 = vector.extract_strided_slice %0 {offsets = [0, 11], sizes = [16, 1], strides = [1, 1]} : vector<16x16xi32> to vector<16x1xi32>
    %107 = vector.broadcast %106 : vector<16x1xi32> to vector<16x384xi32>
    %108 = arith.cmpi eq, %5, %107 : vector<16x384xi32>
    %109 = vector.extract_strided_slice %1 {offsets = [0, 11], sizes = [16, 1], strides = [1, 1]} : vector<16x16xf32> to vector<16x1xf32>
    %cst_14 = arith.constant 0.000000e+00 : f32
    %110 = vector.shape_cast %109 : vector<16x1xf32> to vector<16x1xf32>
    %111 = vector.broadcast %110 : vector<16x1xf32> to vector<16x384xf32>
    %112 = vector.broadcast %cst_14 : f32 to vector<16x384xf32>
    %113 = arith.select %108, %111, %112 : vector<16x384xi1>, vector<16x384xf32>
    %114 = arith.addf %105, %113 : vector<16x384xf32>
    %115 = vector.extract_strided_slice %0 {offsets = [0, 12], sizes = [16, 1], strides = [1, 1]} : vector<16x16xi32> to vector<16x1xi32>
    %116 = vector.broadcast %115 : vector<16x1xi32> to vector<16x384xi32>
    %117 = arith.cmpi eq, %5, %116 : vector<16x384xi32>
    %118 = vector.extract_strided_slice %1 {offsets = [0, 12], sizes = [16, 1], strides = [1, 1]} : vector<16x16xf32> to vector<16x1xf32>
    %cst_15 = arith.constant 0.000000e+00 : f32
    %119 = vector.shape_cast %118 : vector<16x1xf32> to vector<16x1xf32>
    %120 = vector.broadcast %119 : vector<16x1xf32> to vector<16x384xf32>
    %121 = vector.broadcast %cst_15 : f32 to vector<16x384xf32>
    %122 = arith.select %117, %120, %121 : vector<16x384xi1>, vector<16x384xf32>
    %123 = arith.addf %114, %122 : vector<16x384xf32>
    %124 = vector.extract_strided_slice %0 {offsets = [0, 13], sizes = [16, 1], strides = [1, 1]} : vector<16x16xi32> to vector<16x1xi32>
    %125 = vector.broadcast %124 : vector<16x1xi32> to vector<16x384xi32>
    %126 = arith.cmpi eq, %5, %125 : vector<16x384xi32>
    %127 = vector.extract_strided_slice %1 {offsets = [0, 13], sizes = [16, 1], strides = [1, 1]} : vector<16x16xf32> to vector<16x1xf32>
    %cst_16 = arith.constant 0.000000e+00 : f32
    %128 = vector.shape_cast %127 : vector<16x1xf32> to vector<16x1xf32>
    %129 = vector.broadcast %128 : vector<16x1xf32> to vector<16x384xf32>
    %130 = vector.broadcast %cst_16 : f32 to vector<16x384xf32>
    %131 = arith.select %126, %129, %130 : vector<16x384xi1>, vector<16x384xf32>
    %132 = arith.addf %123, %131 : vector<16x384xf32>
    %133 = vector.extract_strided_slice %0 {offsets = [0, 14], sizes = [16, 1], strides = [1, 1]} : vector<16x16xi32> to vector<16x1xi32>
    %134 = vector.broadcast %133 : vector<16x1xi32> to vector<16x384xi32>
    %135 = arith.cmpi eq, %5, %134 : vector<16x384xi32>
    %136 = vector.extract_strided_slice %1 {offsets = [0, 14], sizes = [16, 1], strides = [1, 1]} : vector<16x16xf32> to vector<16x1xf32>
    %cst_17 = arith.constant 0.000000e+00 : f32
    %137 = vector.shape_cast %136 : vector<16x1xf32> to vector<16x1xf32>
    %138 = vector.broadcast %137 : vector<16x1xf32> to vector<16x384xf32>
    %139 = vector.broadcast %cst_17 : f32 to vector<16x384xf32>
    %140 = arith.select %135, %138, %139 : vector<16x384xi1>, vector<16x384xf32>
    %141 = arith.addf %132, %140 : vector<16x384xf32>
    %142 = vector.extract_strided_slice %0 {offsets = [0, 15], sizes = [16, 1], strides = [1, 1]} : vector<16x16xi32> to vector<16x1xi32>
    %143 = vector.broadcast %142 : vector<16x1xi32> to vector<16x384xi32>
    %144 = arith.cmpi eq, %5, %143 : vector<16x384xi32>
    %145 = vector.extract_strided_slice %1 {offsets = [0, 15], sizes = [16, 1], strides = [1, 1]} : vector<16x16xf32> to vector<16x1xf32>
    %cst_18 = arith.constant 0.000000e+00 : f32
    %146 = vector.shape_cast %145 : vector<16x1xf32> to vector<16x1xf32>
    %147 = vector.broadcast %146 : vector<16x1xf32> to vector<16x384xf32>
    %148 = vector.broadcast %cst_18 : f32 to vector<16x384xf32>
    %149 = arith.select %144, %147, %148 : vector<16x384xi1>, vector<16x384xf32>
    %150 = arith.addf %141, %149 : vector<16x384xf32>
    %151 = arith.truncf %150 : vector<16x384xf32> to vector<16x384xbf16>
    %c0_19 = arith.constant 0 : index
    %c0_20 = arith.constant 0 : index
    %152 = vector.load %arg4[%c0_19, %c0_20] : memref<384x128xbf16, #tpu.memory_space<vmem>>, vector<384x128xbf16>
    %cst_21 = arith.constant dense<0.000000e+00> : vector<16x128xf32>
    %153 = tpu.matmul %151, %152, %cst_21 {dimension_numbers = #tpu.dot_dimension_numbers<[1], [0], [0], [1], [0, 0, 1, 1], [], []>} : vector<16x384xbf16>, vector<384x128xbf16>, vector<16x128xf32> -> vector<16x128xf32>
    %c0_i32 = arith.constant 0 : i32
    %154 = arith.cmpi eq, %arg1, %c0_i32 : i32
    %155 = arith.extui %154 : i1 to i32
    %c0_i32_22 = arith.constant 0 : i32
    %156 = arith.cmpi ne, %155, %c0_i32_22 : i32
    scf.if %156 {
      %c0_25 = arith.constant 0 : index
      %c0_26 = arith.constant 0 : index
      %160 = vector.load %arg5[%c0_25, %c0_26] : memref<16x128xf32, #tpu.memory_space<vmem>>, vector<16x128xf32>
      tpu.vector_store %arg5[%c0_25, %c0_26], %153 {strides = array<i32>} : memref<16x128xf32, #tpu.memory_space<vmem>>, vector<16x128xf32>,
    } else {
    }
    %c0_i32_23 = arith.constant 0 : i32
    %157 = arith.cmpi sgt, %arg1, %c0_i32_23 : i32
    %158 = arith.extui %157 : i1 to i32
    %c0_i32_24 = arith.constant 0 : i32
    %159 = arith.cmpi ne, %158, %c0_i32_24 : i32
    scf.if %159 {
      %c0_25 = arith.constant 0 : index
      %c0_26 = arith.constant 0 : index
      %160 = vector.load %arg5[%c0_25, %c0_26] : memref<16x128xf32, #tpu.memory_space<vmem>>, vector<16x128xf32>
      %161 = arith.addf %160, %153 : vector<16x128xf32>
      %c0_27 = arith.constant 0 : index
      %c0_28 = arith.constant 0 : index
      %162 = vector.load %arg5[%c0_27, %c0_28] : memref<16x128xf32, #tpu.memory_space<vmem>>, vector<16x128xf32>
      tpu.vector_store %arg5[%c0_27, %c0_28], %161 {strides = array<i32>} : memref<16x128xf32, #tpu.memory_space<vmem>>, vector<16x128xf32>,
    } else {
    }
    return
  }
  func.func @transform_0(%arg0: i32, %arg1: i32) -> (i32, i32) {
    %c0_i32 = arith.constant 0 : i32
    %c0_i32_0 = arith.constant 0 : i32
    return %arg0, %c0_i32 : i32, i32
  }
  func.func @transform_1(%arg0: i32, %arg1: i32) -> (i32, i32) {
    %c0_i32 = arith.constant 0 : i32
    %c0_i32_0 = arith.constant 0 : i32
    return %arg0, %c0_i32 : i32, i32
  }
  func.func @transform_2(%arg0: i32, %arg1: i32) -> (i32, i32) {
    %c0_i32 = arith.constant 0 : i32
    %c0_i32_0 = arith.constant 0 : i32
    return %arg1, %c0_i32 : i32, i32
  }
  func.func @transform_3(%arg0: i32, %arg1: i32) -> (i32, i32) {
    %c0_i32 = arith.constant 0 : i32
    %c0_i32_0 = arith.constant 0 : i32
    return %arg0, %c0_i32 : i32, i32
  }
}

</mosaic_0001>

<llo_original>
// kernel: tpu_custom_call.1
$region0: #{tpu_custom_call.1}
  #allocation0 [shape = 'u32[]', space=smem, size = 0x4, offset = 0x4, fixed_abs, tag = 'smem constant byte address 0x4 - core index']
  #allocation1 [shape = 'u32[72,128]{1,0:T(1,128)}', space=vmem, size = 0x9000, scoped, tag = 'internal scratch']
  %s0 = inlined_call_operand.hbm [shape: s32[16,16], index: 0, kind: input, shape index: {}]
  %s1 = inlined_call_operand.hbm [shape: f32[16,16], index: 1, kind: input, shape index: {}]
  %s2 = inlined_call_operand.hbm [shape: bf16[384,128], index: 2, kind: input, shape index: {}]
  %s3 = inlined_call_operand.hbm [shape: f32[16,128], index: 3, kind: output, shape index: {}]
  %s4 = sld [smem:[#allocation0]]
  $region42: #{tpu_custom_call.1} parent=0
    _
  %s6 = ssub.s32 1, %s4
  %s7 = scalar_select 0, %s6, %s4
  $region1: #{tpu_custom_call.1} parent=0
    #allocation2 [shape = 'u8[8192]{0}', space=vmem, size = 0x2000, scoped, tag = 'input window, operand 0, single buffered']
    #allocation3 [shape = 's32[1]{0}', space=sflag, size = 0x4, scoped, tag = 'scoped memory for tpu_custom_call.1']
    #allocation4 [shape = 's32[1]{0}', space=sflag, size = 0x4, scoped, tag = 'scoped memory for tpu_custom_call.1']
    #allocation5 [shape = 'u8[8192]{0}', space=vmem, size = 0x2000, scoped, tag = 'input window, operand 1, single buffered']
    #allocation6 [shape = 's32[1]{0}', space=sflag, size = 0x4, scoped, tag = 'scoped memory for tpu_custom_call.1']
    #allocation7 [shape = 'u8[98304]{0}', space=vmem, size = 0x18000, scoped, tag = 'input window, operand 2, single buffered']
    #allocation8 [shape = 'u8[8192]{0}', space=vmem, size = 0x2000, scoped, tag = 'output window, operand 0, single buffered']
    %8 = vsyncpa [#allocation3], 0
    %9 = vsyncpa [#allocation6], 0
    %10 = vsyncpa [#allocation4], 0
    // Predicated region
    $region2: #{tpu_custom_call.1} parent=1 // pred_check
      _
    $region3: #{tpu_custom_call.1} parent=1 // pred_check_branch
      %12 = sbr.rel (0) target = $region5
    $region4: #{tpu_custom_call.1} parent=1 // pred_region
      %14 = vsyncadd [#allocation3], 0
      %s15 = sshll.u32 %s0, 4
      %s16 = int_to_ptr.hbm [resolvable:$true] %s15
      %s17 = sshll.u32 [#allocation2], 4
      %s18 = int_to_ptr.vmem [resolvable:$true] %s17
      %23 = dma.hbm_to_vmem [thread:$0]  %s16, 256, %s18, [#allocation3], 128, 128, 8
    $region5: #{tpu_custom_call.1} parent=1 // pred_fallthru
      _
    // Predicated region
    $region6: #{tpu_custom_call.1} parent=1 // pred_check
      _
    $region7: #{tpu_custom_call.1} parent=1 // pred_check_branch
      %25 = sbr.rel (0) target = $region9
    $region8: #{tpu_custom_call.1} parent=1 // pred_region
      %27 = vsyncadd [#allocation6], 0
      %s28 = sshll.u32 %s1, 4
      %s29 = int_to_ptr.hbm [resolvable:$true] %s28
      %s30 = sshll.u32 [#allocation5], 4
      %s31 = int_to_ptr.vmem [resolvable:$true] %s30
      %36 = dma.hbm_to_vmem [thread:$0]  %s29, 256, %s31, [#allocation6], 128, 128, 8
    $region9: #{tpu_custom_call.1} parent=1 // pred_fallthru
      _
    // Predicated region
    $region10: #{tpu_custom_call.1} parent=1 // pred_check
      _
    $region11: #{tpu_custom_call.1} parent=1 // pred_check_branch
      %38 = sbr.rel (0) target = $region13
    $region12: #{tpu_custom_call.1} parent=1 // pred_region
      %40 = vsyncadd [#allocation6], 0
      %s41 = sshll.u32 %s2, 4
      %s42 = int_to_ptr.hbm [resolvable:$true] %s41
      %s43 = sshll.u32 [#allocation7], 4
      %s44 = int_to_ptr.vmem [resolvable:$true] %s43
      %49 = dma.hbm_to_vmem [thread:$0]  %s42, 3072, %s44, [#allocation6], 64, 64, 4
    $region13: #{tpu_custom_call.1} parent=1 // pred_fallthru
      _
    // Predicated region
    $region14: #{tpu_custom_call.1} parent=1 // pred_check
      _
    $region15: #{tpu_custom_call.1} parent=1 // pred_check_branch
      %51 = sbr.rel (0) target = $region17
    $region16: #{tpu_custom_call.1} parent=1 // pred_region
      %53 = dma.done [#allocation3], 256
    $region17: #{tpu_custom_call.1} parent=1 // pred_fallthru
      _
    // Predicated region
    $region18: #{tpu_custom_call.1} parent=1 // pred_check
      _
    $region19: #{tpu_custom_call.1} parent=1 // pred_check_branch
      %55 = sbr.rel (0) target = $region21
    $region20: #{tpu_custom_call.1} parent=1 // pred_region
      %57 = dma.done [#allocation6], 256
    $region21: #{tpu_custom_call.1} parent=1 // pred_fallthru
      _
    // Predicated region
    $region22: #{tpu_custom_call.1} parent=1 // pred_check
      _
    $region23: #{tpu_custom_call.1} parent=1 // pred_check_branch
      %59 = sbr.rel (0) target = $region25
    $region24: #{tpu_custom_call.1} parent=1 // pred_region
      %61 = dma.done [#allocation6], 3072
    $region25: #{tpu_custom_call.1} parent=1 // pred_fallthru
      _
    %v62 = vld [vmem:[#allocation2] sm:$0xff]
    %v63 = vld [vmem:[#allocation2 + $0x8] sm:$0xff]
    %v64 = vld [vmem:[#allocation5] sm:$0xff]
    %v65 = vld [vmem:[#allocation5 + $0x8] sm:$0xff]
    %v66 = vlaneseq
    %v67 = vand.u32 %v66, 127
    %v68 = vadd.s32 %v67, 128
    %v69 = vadd.s32 %v67, 256
    %s70 = smul.u32 0, 384
    %v71 = vstv %s70
    %v72 = vadd.s32 %v67, %v71
    %v73 = vadd.s32 %v68, %v71
    %v74 = vadd.s32 %v69, %v71
    %75 = vset.pattern.permute.xlu0 0
    %76 = vperm.xlu0 %75, %v62
    %v77 = vpop.permute.xlu0 %76
    %78 = vset.pattern.permute.xlu0 0
    %79 = vperm.xlu0 %78, %v63
    %v80 = vpop.permute.xlu0 %79
    %vm81 = vcmp.eq.s32.totalorder %v72, %v77
    %vm82 = vcmp.eq.s32.totalorder %v73, %v77
    %vm83 = vcmp.eq.s32.totalorder %v74, %v77
    %vm84 = vcmp.eq.s32.totalorder %v72, %v80
    %vm85 = vcmp.eq.s32.totalorder %v73, %v80
    %vm86 = vcmp.eq.s32.totalorder %v74, %v80
    %88 = vset.pattern.permute.xlu0 0
    %89 = vperm.xlu0 %88, %v64
    %v90 = vpop.permute.xlu0 %89
    %93 = vset.pattern.permute.xlu0 0
    %94 = vperm.xlu0 %93, %v65
    %v95 = vpop.permute.xlu0 %94
    %v97 = vsel %vm81, %v90, 0.0
    %v98 = vsel %vm82, %v90, 0.0
    %v99 = vsel %vm83, %v90, 0.0
    %v100 = vsel %vm84, %v95, 0.0
    %v101 = vsel %vm85, %v95, 0.0
    %v102 = vsel %vm86, %v95, 0.0
    %v103 = vadd.f32 %v97, 0.0
    %v104 = vadd.f32 %v98, 0.0
    %v105 = vadd.f32 %v99, 0.0
    %v106 = vadd.f32 %v100, 0.0
    %v107 = vadd.f32 %v101, 0.0
    %v108 = vadd.f32 %v102, 0.0
    %109 = vset.pattern.permute.xlu0 1
    %110 = vperm.xlu0 %109, %v62
    %v111 = vpop.permute.xlu0 %110
    %112 = vset.pattern.permute.xlu0 1
    %113 = vperm.xlu0 %112, %v63
    %v114 = vpop.permute.xlu0 %113
    %vm115 = vcmp.eq.s32.totalorder %v72, %v111
    %vm116 = vcmp.eq.s32.totalorder %v73, %v111
    %vm117 = vcmp.eq.s32.totalorder %v74, %v111
    %vm118 = vcmp.eq.s32.totalorder %v72, %v114
    %vm119 = vcmp.eq.s32.totalorder %v73, %v114
    %vm120 = vcmp.eq.s32.totalorder %v74, %v114
    %121 = vset.pattern.permute.xlu0 1
    %122 = vperm.xlu0 %121, %v64
    %v123 = vpop.permute.xlu0 %122
    %125 = vset.pattern.permute.xlu0 1
    %126 = vperm.xlu0 %125, %v65
    %v127 = vpop.permute.xlu0 %126
    %v129 = vsel %vm115, %v123, 0.0
    %v130 = vsel %vm116, %v123, 0.0
    %v131 = vsel %vm117, %v123, 0.0
    %v132 = vsel %vm118, %v127, 0.0
    %v133 = vsel %vm119, %v127, 0.0
    %v134 = vsel %vm120, %v127, 0.0
    %v135 = vadd.f32 %v103, %v129
    %v136 = vadd.f32 %v104, %v130
    %v137 = vadd.f32 %v105, %v131
    %v138 = vadd.f32 %v106, %v132
    %v139 = vadd.f32 %v107, %v133
    %v140 = vadd.f32 %v108, %v134
    %141 = vset.pattern.permute.xlu0 2
    %142 = vperm.xlu0 %141, %v62
    %v143 = vpop.permute.xlu0 %142
    %144 = vset.pattern.permute.xlu0 2
    %145 = vperm.xlu0 %144, %v63
    %v146 = vpop.permute.xlu0 %145
    %vm147 = vcmp.eq.s32.totalorder %v72, %v143
    %vm148 = vcmp.eq.s32.totalorder %v73, %v143
    %vm149 = vcmp.eq.s32.totalorder %v74, %v143
    %vm150 = vcmp.eq.s32.totalorder %v72, %v146
    %vm151 = vcmp.eq.s32.totalorder %v73, %v146
    %vm152 = vcmp.eq.s32.totalorder %v74, %v146
    %153 = vset.pattern.permute.xlu0 2
    %154 = vperm.xlu0 %153, %v64
    %v155 = vpop.permute.xlu0 %154
    %157 = vset.pattern.permute.xlu0 2
    %158 = vperm.xlu0 %157, %v65
    %v159 = vpop.permute.xlu0 %158
    %v161 = vsel %vm147, %v155, 0.0
    %v162 = vsel %vm148, %v155, 0.0
    %v163 = vsel %vm149, %v155, 0.0
    %v164 = vsel %vm150, %v159, 0.0
    %v165 = vsel %vm151, %v159, 0.0
    %v166 = vsel %vm152, %v159, 0.0
    %v167 = vadd.f32 %v135, %v161
    %v168 = vadd.f32 %v136, %v162
    %v169 = vadd.f32 %v137, %v163
    %v170 = vadd.f32 %v138, %v164
    %v171 = vadd.f32 %v139, %v165
    %v172 = vadd.f32 %v140, %v166
    %173 = vset.pattern.permute.xlu0 3
    %174 = vperm.xlu0 %173, %v62
    %v175 = vpop.permute.xlu0 %174
    %176 = vset.pattern.permute.xlu0 3
    %177 = vperm.xlu0 %176, %v63
    %v178 = vpop.permute.xlu0 %177
    %vm179 = vcmp.eq.s32.totalorder %v72, %v175
    %vm180 = vcmp.eq.s32.totalorder %v73, %v175
    %vm181 = vcmp.eq.s32.totalorder %v74, %v175
    %vm182 = vcmp.eq.s32.totalorder %v72, %v178
    %vm183 = vcmp.eq.s32.totalorder %v73, %v178
    %vm184 = vcmp.eq.s32.totalorder %v74, %v178
    %185 = vset.pattern.permute.xlu0 3
    %186 = vperm.xlu0 %185, %v64
    %v187 = vpop.permute.xlu0 %186
    %189 = vset.pattern.permute.xlu0 3
    %190 = vperm.xlu0 %189, %v65
    %v191 = vpop.permute.xlu0 %190
    %v193 = vsel %vm179, %v187, 0.0
    %v194 = vsel %vm180, %v187, 0.0
    %v195 = vsel %vm181, %v187, 0.0
    %v196 = vsel %vm182, %v191, 0.0
    %v197 = vsel %vm183, %v191, 0.0
    %v198 = vsel %vm184, %v191, 0.0
    %v199 = vadd.f32 %v167, %v193
    %v200 = vadd.f32 %v168, %v194
    %v201 = vadd.f32 %v169, %v195
    %v202 = vadd.f32 %v170, %v196
    %v203 = vadd.f32 %v171, %v197
    %v204 = vadd.f32 %v172, %v198
    %205 = vset.pattern.permute.xlu0 4
    %206 = vperm.xlu0 %205, %v62
    %v207 = vpop.permute.xlu0 %206
    %208 = vset.pattern.permute.xlu0 4
    %209 = vperm.xlu0 %208, %v63
    %v210 = vpop.permute.xlu0 %209
    %vm211 = vcmp.eq.s32.totalorder %v72, %v207
    %vm212 = vcmp.eq.s32.totalorder %v73, %v207
    %vm213 = vcmp.eq.s32.totalorder %v74, %v207
    %vm214 = vcmp.eq.s32.totalorder %v72, %v210
    %vm215 = vcmp.eq.s32.totalorder %v73, %v210
    %vm216 = vcmp.eq.s32.totalorder %v74, %v210
    %217 = vset.pattern.permute.xlu0 4
    %218 = vperm.xlu0 %217, %v64
    %v219 = vpop.permute.xlu0 %218
    %221 = vset.pattern.permute.xlu0 4
    %222 = vperm.xlu0 %221, %v65
    %v223 = vpop.permute.xlu0 %222
    %v225 = vsel %vm211, %v219, 0.0
    %v226 = vsel %vm212, %v219, 0.0
    %v227 = vsel %vm213, %v219, 0.0
    %v228 = vsel %vm214, %v223, 0.0
    %v229 = vsel %vm215, %v223, 0.0
    %v230 = vsel %vm216, %v223, 0.0
    %v231 = vadd.f32 %v199, %v225
    %v232 = vadd.f32 %v200, %v226
    %v233 = vadd.f32 %v201, %v227
    %v234 = vadd.f32 %v202, %v228
    %v235 = vadd.f32 %v203, %v229
    %v236 = vadd.f32 %v204, %v230
    %237 = vset.pattern.permute.xlu0 5
    %238 = vperm.xlu0 %237, %v62
    %v239 = vpop.permute.xlu0 %238
    %240 = vset.pattern.permute.xlu0 5
    %241 = vperm.xlu0 %240, %v63
    %v242 = vpop.permute.xlu0 %241
    %vm243 = vcmp.eq.s32.totalorder %v72, %v239
    %vm244 = vcmp.eq.s32.totalorder %v73, %v239
    %vm245 = vcmp.eq.s32.totalorder %v74, %v239
    %vm246 = vcmp.eq.s32.totalorder %v72, %v242
    %vm247 = vcmp.eq.s32.totalorder %v73, %v242
    %vm248 = vcmp.eq.s32.totalorder %v74, %v242
    %249 = vset.pattern.permute.xlu0 5
    %250 = vperm.xlu0 %249, %v64
    %v251 = vpop.permute.xlu0 %250
    %253 = vset.pattern.permute.xlu0 5
    %254 = vperm.xlu0 %253, %v65
    %v255 = vpop.permute.xlu0 %254
    %v257 = vsel %vm243, %v251, 0.0
    %v258 = vsel %vm244, %v251, 0.0
    %v259 = vsel %vm245, %v251, 0.0
    %v260 = vsel %vm246, %v255, 0.0
    %v261 = vsel %vm247, %v255, 0.0
    %v262 = vsel %vm248, %v255, 0.0
    %v263 = vadd.f32 %v231, %v257
    %v264 = vadd.f32 %v232, %v258
    %v265 = vadd.f32 %v233, %v259
    %v266 = vadd.f32 %v234, %v260
    %v267 = vadd.f32 %v235, %v261
    %v268 = vadd.f32 %v236, %v262
    %269 = vset.pattern.permute.xlu0 6
    %270 = vperm.xlu0 %269, %v62
    %v271 = vpop.permute.xlu0 %270
    %272 = vset.pattern.permute.xlu0 6
    %273 = vperm.xlu0 %272, %v63
    %v274 = vpop.permute.xlu0 %273
    %vm275 = vcmp.eq.s32.totalorder %v72, %v271
    %vm276 = vcmp.eq.s32.totalorder %v73, %v271
    %vm277 = vcmp.eq.s32.totalorder %v74, %v271
    %vm278 = vcmp.eq.s32.totalorder %v72, %v274
    %vm279 = vcmp.eq.s32.totalorder %v73, %v274
    %vm280 = vcmp.eq.s32.totalorder %v74, %v274
    %281 = vset.pattern.permute.xlu0 6
    %282 = vperm.xlu0 %281, %v64
    %v283 = vpop.permute.xlu0 %282
    %285 = vset.pattern.permute.xlu0 6
    %286 = vperm.xlu0 %285, %v65
    %v287 = vpop.permute.xlu0 %286
    %v289 = vsel %vm275, %v283, 0.0
    %v290 = vsel %vm276, %v283, 0.0
    %v291 = vsel %vm277, %v283, 0.0
    %v292 = vsel %vm278, %v287, 0.0
    %v293 = vsel %vm279, %v287, 0.0
    %v294 = vsel %vm280, %v287, 0.0
    %v295 = vadd.f32 %v263, %v289
    %v296 = vadd.f32 %v264, %v290
    %v297 = vadd.f32 %v265, %v291
    %v298 = vadd.f32 %v266, %v292
    %v299 = vadd.f32 %v267, %v293
    %v300 = vadd.f32 %v268, %v294
    %301 = vset.pattern.permute.xlu0 7
    %302 = vperm.xlu0 %301, %v62
    %v303 = vpop.permute.xlu0 %302
    %304 = vset.pattern.permute.xlu0 7
    %305 = vperm.xlu0 %304, %v63
    %v306 = vpop.permute.xlu0 %305
    %vm307 = vcmp.eq.s32.totalorder %v72, %v303
    %vm308 = vcmp.eq.s32.totalorder %v73, %v303
    %vm309 = vcmp.eq.s32.totalorder %v74, %v303
    %vm310 = vcmp.eq.s32.totalorder %v72, %v306
    %vm311 = vcmp.eq.s32.totalorder %v73, %v306
    %vm312 = vcmp.eq.s32.totalorder %v74, %v306
    %313 = vset.pattern.permute.xlu0 7
    %314 = vperm.xlu0 %313, %v64
    %v315 = vpop.permute.xlu0 %314
    %317 = vset.pattern.permute.xlu0 7
    %318 = vperm.xlu0 %317, %v65
    %v319 = vpop.permute.xlu0 %318
    %v321 = vsel %vm307, %v315, 0.0
    %v322 = vsel %vm308, %v315, 0.0
    %v323 = vsel %vm309, %v315, 0.0
    %v324 = vsel %vm310, %v319, 0.0
    %v325 = vsel %vm311, %v319, 0.0
    %v326 = vsel %vm312, %v319, 0.0
    %v327 = vadd.f32 %v295, %v321
    %v328 = vadd.f32 %v296, %v322
    %v329 = vadd.f32 %v297, %v323
    %v330 = vadd.f32 %v298, %v324
    %v331 = vadd.f32 %v299, %v325
    %v332 = vadd.f32 %v300, %v326
    %333 = vset.pattern.permute.xlu0 8
    %334 = vperm.xlu0 %333, %v62
    %v335 = vpop.permute.xlu0 %334
    %336 = vset.pattern.permute.xlu0 8
    %337 = vperm.xlu0 %336, %v63
    %v338 = vpop.permute.xlu0 %337
    %vm339 = vcmp.eq.s32.totalorder %v72, %v335
    %vm340 = vcmp.eq.s32.totalorder %v73, %v335
    %vm341 = vcmp.eq.s32.totalorder %v74, %v335
    %vm342 = vcmp.eq.s32.totalorder %v72, %v338
    %vm343 = vcmp.eq.s32.totalorder %v73, %v338
    %vm344 = vcmp.eq.s32.totalorder %v74, %v338
    %345 = vset.pattern.permute.xlu0 8
    %346 = vperm.xlu0 %345, %v64
    %v347 = vpop.permute.xlu0 %346
    %349 = vset.pattern.permute.xlu0 8
    %350 = vperm.xlu0 %349, %v65
    %v351 = vpop.permute.xlu0 %350
    %v353 = vsel %vm339, %v347, 0.0
    %v354 = vsel %vm340, %v347, 0.0
    %v355 = vsel %vm341, %v347, 0.0
    %v356 = vsel %vm342, %v351, 0.0
    %v357 = vsel %vm343, %v351, 0.0
    %v358 = vsel %vm344, %v351, 0.0
    %v359 = vadd.f32 %v327, %v353
    %v360 = vadd.f32 %v328, %v354
    %v361 = vadd.f32 %v329, %v355
    %v362 = vadd.f32 %v330, %v356
    %v363 = vadd.f32 %v331, %v357
    %v364 = vadd.f32 %v332, %v358
    %365 = vset.pattern.permute.xlu0 9
    %366 = vperm.xlu0 %365, %v62
    %v367 = vpop.permute.xlu0 %366
    %368 = vset.pattern.permute.xlu0 9
    %369 = vperm.xlu0 %368, %v63
    %v370 = vpop.permute.xlu0 %369
    %vm371 = vcmp.eq.s32.totalorder %v72, %v367
    %vm372 = vcmp.eq.s32.totalorder %v73, %v367
    %vm373 = vcmp.eq.s32.totalorder %v74, %v367
    %vm374 = vcmp.eq.s32.totalorder %v72, %v370
    %vm375 = vcmp.eq.s32.totalorder %v73, %v370
    %vm376 = vcmp.eq.s32.totalorder %v74, %v370
    %377 = vset.pattern.permute.xlu0 9
    %378 = vperm.xlu0 %377, %v64
    %v379 = vpop.permute.xlu0 %378
    %381 = vset.pattern.permute.xlu0 9
    %382 = vperm.xlu0 %381, %v65
    %v383 = vpop.permute.xlu0 %382
    %v385 = vsel %vm371, %v379, 0.0
    %v386 = vsel %vm372, %v379, 0.0
    %v387 = vsel %vm373, %v379, 0.0
    %v388 = vsel %vm374, %v383, 0.0
    %v389 = vsel %vm375, %v383, 0.0
    %v390 = vsel %vm376, %v383, 0.0
    %v391 = vadd.f32 %v359, %v385
    %v392 = vadd.f32 %v360, %v386
    %v393 = vadd.f32 %v361, %v387
    %v394 = vadd.f32 %v362, %v388
    %v395 = vadd.f32 %v363, %v389
    %v396 = vadd.f32 %v364, %v390
    %397 = vset.pattern.permute.xlu0 10
    %398 = vperm.xlu0 %397, %v62
    %v399 = vpop.permute.xlu0 %398
    %400 = vset.pattern.permute.xlu0 10
    %401 = vperm.xlu0 %400, %v63
    %v402 = vpop.permute.xlu0 %401
    %vm403 = vcmp.eq.s32.totalorder %v72, %v399
    %vm404 = vcmp.eq.s32.totalorder %v73, %v399
    %vm405 = vcmp.eq.s32.totalorder %v74, %v399
    %vm406 = vcmp.eq.s32.totalorder %v72, %v402
    %vm407 = vcmp.eq.s32.totalorder %v73, %v402
    %vm408 = vcmp.eq.s32.totalorder %v74, %v402
    %409 = vset.pattern.permute.xlu0 10
    %410 = vperm.xlu0 %409, %v64
    %v411 = vpop.permute.xlu0 %410
    %413 = vset.pattern.permute.xlu0 10
    %414 = vperm.xlu0 %413, %v65
    %v415 = vpop.permute.xlu0 %414
    %v417 = vsel %vm403, %v411, 0.0
    %v418 = vsel %vm404, %v411, 0.0
    %v419 = vsel %vm405, %v411, 0.0
    %v420 = vsel %vm406, %v415, 0.0
    %v421 = vsel %vm407, %v415, 0.0
    %v422 = vsel %vm408, %v415, 0.0
    %v423 = vadd.f32 %v391, %v417
    %v424 = vadd.f32 %v392, %v418
    %v425 = vadd.f32 %v393, %v419
    %v426 = vadd.f32 %v394, %v420
    %v427 = vadd.f32 %v395, %v421
    %v428 = vadd.f32 %v396, %v422
    %429 = vset.pattern.permute.xlu0 11
    %430 = vperm.xlu0 %429, %v62
    %v431 = vpop.permute.xlu0 %430
    %432 = vset.pattern.permute.xlu0 11
    %433 = vperm.xlu0 %432, %v63
    %v434 = vpop.permute.xlu0 %433
    %vm435 = vcmp.eq.s32.totalorder %v72, %v431
    %vm436 = vcmp.eq.s32.totalorder %v73, %v431
    %vm437 = vcmp.eq.s32.totalorder %v74, %v431
    %vm438 = vcmp.eq.s32.totalorder %v72, %v434
    %vm439 = vcmp.eq.s32.totalorder %v73, %v434
    %vm440 = vcmp.eq.s32.totalorder %v74, %v434
    %441 = vset.pattern.permute.xlu0 11
    %442 = vperm.xlu0 %441, %v64
    %v443 = vpop.permute.xlu0 %442
    %445 = vset.pattern.permute.xlu0 11
    %446 = vperm.xlu0 %445, %v65
    %v447 = vpop.permute.xlu0 %446
    %v449 = vsel %vm435, %v443, 0.0
    %v450 = vsel %vm436, %v443, 0.0
    %v451 = vsel %vm437, %v443, 0.0
    %v452 = vsel %vm438, %v447, 0.0
    %v453 = vsel %vm439, %v447, 0.0
    %v454 = vsel %vm440, %v447, 0.0
    %v455 = vadd.f32 %v423, %v449
    %v456 = vadd.f32 %v424, %v450
    %v457 = vadd.f32 %v425, %v451
    %v458 = vadd.f32 %v426, %v452
    %v459 = vadd.f32 %v427, %v453
    %v460 = vadd.f32 %v428, %v454
    %461 = vset.pattern.permute.xlu0 12
    %462 = vperm.xlu0 %461, %v62
    %v463 = vpop.permute.xlu0 %462
    %464 = vset.pattern.permute.xlu0 12
    %465 = vperm.xlu0 %464, %v63
    %v466 = vpop.permute.xlu0 %465
    %vm467 = vcmp.eq.s32.totalorder %v72, %v463
    %vm468 = vcmp.eq.s32.totalorder %v73, %v463
    %vm469 = vcmp.eq.s32.totalorder %v74, %v463
    %vm470 = vcmp.eq.s32.totalorder %v72, %v466
    %vm471 = vcmp.eq.s32.totalorder %v73, %v466
    %vm472 = vcmp.eq.s32.totalorder %v74, %v466
    %473 = vset.pattern.permute.xlu0 12
    %474 = vperm.xlu0 %473, %v64
    %v475 = vpop.permute.xlu0 %474
    %477 = vset.pattern.permute.xlu0 12
    %478 = vperm.xlu0 %477, %v65
    %v479 = vpop.permute.xlu0 %478
    %v481 = vsel %vm467, %v475, 0.0
    %v482 = vsel %vm468, %v475, 0.0
    %v483 = vsel %vm469, %v475, 0.0
    %v484 = vsel %vm470, %v479, 0.0
    %v485 = vsel %vm471, %v479, 0.0
    %v486 = vsel %vm472, %v479, 0.0
    %v487 = vadd.f32 %v455, %v481
    %v488 = vadd.f32 %v456, %v482
    %v489 = vadd.f32 %v457, %v483
    %v490 = vadd.f32 %v458, %v484
    %v491 = vadd.f32 %v459, %v485
    %v492 = vadd.f32 %v460, %v486
    %493 = vset.pattern.permute.xlu0 13
    %494 = vperm.xlu0 %493, %v62
    %v495 = vpop.permute.xlu0 %494
    %496 = vset.pattern.permute.xlu0 13
    %497 = vperm.xlu0 %496, %v63
    %v498 = vpop.permute.xlu0 %497
    %vm499 = vcmp.eq.s32.totalorder %v72, %v495
    %vm500 = vcmp.eq.s32.totalorder %v73, %v495
    %vm501 = vcmp.eq.s32.totalorder %v74, %v495
    %vm502 = vcmp.eq.s32.totalorder %v72, %v498
    %vm503 = vcmp.eq.s32.totalorder %v73, %v498
    %vm504 = vcmp.eq.s32.totalorder %v74, %v498
    %505 = vset.pattern.permute.xlu0 13
    %506 = vperm.xlu0 %505, %v64
    %v507 = vpop.permute.xlu0 %506
    %509 = vset.pattern.permute.xlu0 13
    %510 = vperm.xlu0 %509, %v65
    %v511 = vpop.permute.xlu0 %510
    %v513 = vsel %vm499, %v507, 0.0
    %v514 = vsel %vm500, %v507, 0.0
    %v515 = vsel %vm501, %v507, 0.0
    %v516 = vsel %vm502, %v511, 0.0
    %v517 = vsel %vm503, %v511, 0.0
    %v518 = vsel %vm504, %v511, 0.0
    %v519 = vadd.f32 %v487, %v513
    %v520 = vadd.f32 %v488, %v514
    %v521 = vadd.f32 %v489, %v515
    %v522 = vadd.f32 %v490, %v516
    %v523 = vadd.f32 %v491, %v517
    %v524 = vadd.f32 %v492, %v518
    %525 = vset.pattern.permute.xlu0 14
    %526 = vperm.xlu0 %525, %v62
    %v527 = vpop.permute.xlu0 %526
    %528 = vset.pattern.permute.xlu0 14
    %529 = vperm.xlu0 %528, %v63
    %v530 = vpop.permute.xlu0 %529
    %vm531 = vcmp.eq.s32.totalorder %v72, %v527
    %vm532 = vcmp.eq.s32.totalorder %v73, %v527
    %vm533 = vcmp.eq.s32.totalorder %v74, %v527
    %vm534 = vcmp.eq.s32.totalorder %v72, %v530
    %vm535 = vcmp.eq.s32.totalorder %v73, %v530
    %vm536 = vcmp.eq.s32.totalorder %v74, %v530
    %537 = vset.pattern.permute.xlu0 14
    %538 = vperm.xlu0 %537, %v64
    %v539 = vpop.permute.xlu0 %538
    %541 = vset.pattern.permute.xlu0 14
    %542 = vperm.xlu0 %541, %v65
    %v543 = vpop.permute.xlu0 %542
    %v545 = vsel %vm531, %v539, 0.0
    %v546 = vsel %vm532, %v539, 0.0
    %v547 = vsel %vm533, %v539, 0.0
    %v548 = vsel %vm534, %v543, 0.0
    %v549 = vsel %vm535, %v543, 0.0
    %v550 = vsel %vm536, %v543, 0.0
    %v551 = vadd.f32 %v519, %v545
    %v552 = vadd.f32 %v520, %v546
    %v553 = vadd.f32 %v521, %v547
    %v554 = vadd.f32 %v522, %v548
    %v555 = vadd.f32 %v523, %v549
    %v556 = vadd.f32 %v524, %v550
    %557 = vset.pattern.permute.xlu0 15
    %558 = vperm.xlu0 %557, %v62
    %v559 = vpop.permute.xlu0 %558
    %560 = vset.pattern.permute.xlu0 15
    %561 = vperm.xlu0 %560, %v63
    %v562 = vpop.permute.xlu0 %561
    %vm563 = vcmp.eq.s32.totalorder %v72, %v559
    %vm564 = vcmp.eq.s32.totalorder %v73, %v559
    %vm565 = vcmp.eq.s32.totalorder %v74, %v559
    %vm566 = vcmp.eq.s32.totalorder %v72, %v562
    %vm567 = vcmp.eq.s32.totalorder %v73, %v562
    %vm568 = vcmp.eq.s32.totalorder %v74, %v562
    %569 = vset.pattern.permute.xlu0 15
    %570 = vperm.xlu0 %569, %v64
    %v571 = vpop.permute.xlu0 %570
    %573 = vset.pattern.permute.xlu0 15
    %574 = vperm.xlu0 %573, %v65
    %v575 = vpop.permute.xlu0 %574
    %v577 = vsel %vm563, %v571, 0.0
    %v578 = vsel %vm564, %v571, 0.0
    %v579 = vsel %vm565, %v571, 0.0
    %v580 = vsel %vm566, %v575, 0.0
    %v581 = vsel %vm567, %v575, 0.0
    %v582 = vsel %vm568, %v575, 0.0
    %v583 = vadd.f32 %v551, %v577
    %v584 = vadd.f32 %v552, %v578
    %v585 = vadd.f32 %v553, %v579
    %v586 = vadd.f32 %v554, %v580
    %v587 = vadd.f32 %v555, %v581
    %v588 = vadd.f32 %v556, %v582
    %v589 = vpack.c.bf16 %v586, %v583
    %v590 = vpack.c.bf16 %v587, %v584
    %v591 = vpack.c.bf16 %v588, %v585
    %v592 = vld [vmem:[#allocation7] sm:$0xf]
    %v593 = vld [vmem:[#allocation7 + $0x4] sm:$0xf]
    %v594 = vld [vmem:[#allocation7 + $0x8] sm:$0xf]
    %v595 = vld [vmem:[#allocation7 + $0xc] sm:$0xf]
    %v596 = vld [vmem:[#allocation7 + $0x10] sm:$0xf]
    %v597 = vld [vmem:[#allocation7 + $0x14] sm:$0xf]
    %v598 = vld [vmem:[#allocation7 + $0x18] sm:$0xf]
    %v599 = vld [vmem:[#allocation7 + $0x1c] sm:$0xf]
    %v600 = vld [vmem:[#allocation7 + $0x20] sm:$0xf]
    %v601 = vld [vmem:[#allocation7 + $0x24] sm:$0xf]
    %v602 = vld [vmem:[#allocation7 + $0x28] sm:$0xf]
    %v603 = vld [vmem:[#allocation7 + $0x2c] sm:$0xf]
    %v604 = vld [vmem:[#allocation7 + $0x30] sm:$0xf]
    %v605 = vld [vmem:[#allocation7 + $0x34] sm:$0xf]
    %v606 = vld [vmem:[#allocation7 + $0x38] sm:$0xf]
    %v607 = vld [vmem:[#allocation7 + $0x3c] sm:$0xf]
    %v608 = vld [vmem:[#allocation7 + $0x40] sm:$0xf]
    %v609 = vld [vmem:[#allocation7 + $0x44] sm:$0xf]
    %v610 = vld [vmem:[#allocation7 + $0x48] sm:$0xf]
    %v611 = vld [vmem:[#allocation7 + $0x4c] sm:$0xf]
    %v612 = vld [vmem:[#allocation7 + $0x50] sm:$0xf]
    %v613 = vld [vmem:[#allocation7 + $0x54] sm:$0xf]
    %v614 = vld [vmem:[#allocation7 + $0x58] sm:$0xf]
    %v615 = vld [vmem:[#allocation7 + $0x5c] sm:$0xf]
    %v616 = vld [vmem:[#allocation7 + $0x60] sm:$0xf]
    %v617 = vld [vmem:[#allocation7 + $0x64] sm:$0xf]
    %v618 = vld [vmem:[#allocation7 + $0x68] sm:$0xf]
    %v619 = vld [vmem:[#allocation7 + $0x6c] sm:$0xf]
    %v620 = vld [vmem:[#allocation7 + $0x70] sm:$0xf]
    %v621 = vld [vmem:[#allocation7 + $0x74] sm:$0xf]
    %v622 = vld [vmem:[#allocation7 + $0x78] sm:$0xf]
    %v623 = vld [vmem:[#allocation7 + $0x7c] sm:$0xf]
    %v624 = vld [vmem:[#allocation7 + $0x80] sm:$0xf]
    %v625 = vld [vmem:[#allocation7 + $0x84] sm:$0xf]
    %v626 = vld [vmem:[#allocation7 + $0x88] sm:$0xf]
    %v627 = vld [vmem:[#allocation7 + $0x8c] sm:$0xf]
    %v628 = vld [vmem:[#allocation7 + $0x90] sm:$0xf]
    %v629 = vld [vmem:[#allocation7 + $0x94] sm:$0xf]
    %v630 = vld [vmem:[#allocation7 + $0x98] sm:$0xf]
    %v631 = vld [vmem:[#allocation7 + $0x9c] sm:$0xf]
    %v632 = vld [vmem:[#allocation7 + $0xa0] sm:$0xf]
    %v633 = vld [vmem:[#allocation7 + $0xa4] sm:$0xf]
    %v634 = vld [vmem:[#allocation7 + $0xa8] sm:$0xf]
    %v635 = vld [vmem:[#allocation7 + $0xac] sm:$0xf]
    %v636 = vld [vmem:[#allocation7 + $0xb0] sm:$0xf]
    %v637 = vld [vmem:[#allocation7 + $0xb4] sm:$0xf]
    %v638 = vld [vmem:[#allocation7 + $0xb8] sm:$0xf]
    %v639 = vld [vmem:[#allocation7 + $0xbc] sm:$0xf]
    %v688 = vunpack.c.l.b16 %v592
    %v689 = vunpack.c.l.b16 %v593
    %v690 = vunpack.c.l.b16 %v594
    %v691 = vunpack.c.l.b16 %v595
    %v692 = vunpack.c.l.b16 %v596
    %v693 = vunpack.c.l.b16 %v597
    %v694 = vunpack.c.l.b16 %v598
    %v695 = vunpack.c.l.b16 %v599
    %v696 = vunpack.c.l.b16 %v600
    %v697 = vunpack.c.l.b16 %v601
    %v698 = vunpack.c.l.b16 %v602
    %v699 = vunpack.c.l.b16 %v603
    %v700 = vunpack.c.l.b16 %v604
    %v701 = vunpack.c.l.b16 %v605
    %v702 = vunpack.c.l.b16 %v606
    %v703 = vunpack.c.l.b16 %v607
    %v704 = vunpack.c.l.b16 %v608
    %v705 = vunpack.c.l.b16 %v609
    %v706 = vunpack.c.l.b16 %v610
    %v707 = vunpack.c.l.b16 %v611
    %v708 = vunpack.c.l.b16 %v612
    %v709 = vunpack.c.l.b16 %v613
    %v710 = vunpack.c.l.b16 %v614
    %v711 = vunpack.c.l.b16 %v615
    %v712 = vunpack.c.l.b16 %v616
    %v713 = vunpack.c.l.b16 %v617
    %v714 = vunpack.c.l.b16 %v618
    %v715 = vunpack.c.l.b16 %v619
    %v716 = vunpack.c.l.b16 %v620
    %v717 = vunpack.c.l.b16 %v621
    %v718 = vunpack.c.l.b16 %v622
    %v719 = vunpack.c.l.b16 %v623
    %v720 = vunpack.c.l.b16 %v624
    %v721 = vunpack.c.l.b16 %v625
    %v722 = vunpack.c.l.b16 %v626
    %v723 = vunpack.c.l.b16 %v627
    %v724 = vunpack.c.l.b16 %v628
    %v725 = vunpack.c.l.b16 %v629
    %v726 = vunpack.c.l.b16 %v630
    %v727 = vunpack.c.l.b16 %v631
    %v728 = vunpack.c.l.b16 %v632
    %v729 = vunpack.c.l.b16 %v633
    %v730 = vunpack.c.l.b16 %v634
    %v731 = vunpack.c.l.b16 %v635
    %v732 = vunpack.c.l.b16 %v636
    %v733 = vunpack.c.l.b16 %v637
    %v734 = vunpack.c.l.b16 %v638
    %v735 = vunpack.c.l.b16 %v639
    %v736 = vpack.c.b16 %v689, %v688
    %v737 = vpack.c.b16 %v691, %v690
    %v738 = vpack.c.b16 %v693, %v692
    %v739 = vpack.c.b16 %v695, %v694
    %v740 = vpack.c.b16 %v697, %v696
    %v741 = vpack.c.b16 %v699, %v698
    %v742 = vpack.c.b16 %v701, %v700
    %v743 = vpack.c.b16 %v703, %v702
    %v744 = vpack.c.b16 %v705, %v704
    %v745 = vpack.c.b16 %v707, %v706
    %v746 = vpack.c.b16 %v709, %v708
    %v747 = vpack.c.b16 %v711, %v710
    %v748 = vpack.c.b16 %v713, %v712
    %v749 = vpack.c.b16 %v715, %v714
    %v750 = vpack.c.b16 %v717, %v716
    %v751 = vpack.c.b16 %v719, %v718
    %v752 = vpack.c.b16 %v721, %v720
    %v753 = vpack.c.b16 %v723, %v722
    %v754 = vpack.c.b16 %v725, %v724
    %v755 = vpack.c.b16 %v727, %v726
    %v756 = vpack.c.b16 %v729, %v728
    %v757 = vpack.c.b16 %v731, %v730
    %v758 = vpack.c.b16 %v733, %v732
    %v759 = vpack.c.b16 %v735, %v734
    %784 = vmatpush.bf16.msra.mxu0 %v743
    %785 = vmatpush.bf16.msra.mxu0 %v742
    %786 = vmatpush.bf16.msra.mxu0 %v741
    %787 = vmatpush.bf16.msra.mxu0 %v740
    %788 = vmatpush.bf16.msra.mxu0 %v739
    %789 = vmatpush.bf16.msra.mxu0 %v738
    %790 = vmatpush.bf16.msra.mxu0 %v737
    %791 = vmatpush.bf16.msra.mxu0 %v736
    %792 = vmatmul.bf16.gmra.mxu0 %v589
    %v793 = vpop.f32.mrf.mxu0
    %v794 = vadd.f32 0.0, %v793
    %v795 = vpop.f32.mrf.mxu0
    %v796 = vadd.f32 0.0, %v795
    %797 = vdwg.mxu0
    %798 = vmatpush.bf16.msra.mxu0 %v751
    %799 = vmatpush.bf16.msra.mxu0 %v750
    %800 = vmatpush.bf16.msra.mxu0 %v749
    %801 = vmatpush.bf16.msra.mxu0 %v748
    %802 = vmatpush.bf16.msra.mxu0 %v747
    %803 = vmatpush.bf16.msra.mxu0 %v746
    %804 = vmatpush.bf16.msra.mxu0 %v745
    %805 = vmatpush.bf16.msra.mxu0 %v744
    %806 = vmatmul.bf16.gmra.mxu0 %v590
    %v807 = vpop.f32.mrf.mxu0
    %v808 = vadd.f32 %v794, %v807
    %v809 = vpop.f32.mrf.mxu0
    %v810 = vadd.f32 %v796, %v809
    %811 = vdwg.mxu0
    %812 = vmatpush.bf16.msra.mxu0 %v759
    %813 = vmatpush.bf16.msra.mxu0 %v758
    %814 = vmatpush.bf16.msra.mxu0 %v757
    %815 = vmatpush.bf16.msra.mxu0 %v756
    %816 = vmatpush.bf16.msra.mxu0 %v755
    %817 = vmatpush.bf16.msra.mxu0 %v754
    %818 = vmatpush.bf16.msra.mxu0 %v753
    %819 = vmatpush.bf16.msra.mxu0 %v752
    %820 = vmatmul.bf16.gmra.mxu0 %v591
    %v821 = vpop.f32.mrf.mxu0
    %v822 = vadd.f32 %v808, %v821
    %v823 = vpop.f32.mrf.mxu0
    %v824 = vadd.f32 %v810, %v823
    %825 = vdwg.mxu0
    %p826 = scmp.eq.s32.totalorder 0, 0
    // Predicated region
    $region26: #{tpu_custom_call.1} parent=1 // pred_check
      %p827 = pneg %p826
    $region27: #{tpu_custom_call.1} parent=1 // pred_check_branch
      %829 = sbr.rel (%p827) target = $region29
    $region28: #{tpu_custom_call.1} parent=1 // pred_region
      %830 = vst [vmem:[#allocation8] sm:$0xff] %v822
      %831 = vst [vmem:[#allocation8 + $0x8] sm:$0xff] %v824
    $region29: #{tpu_custom_call.1} parent=1 // pred_fallthru
      _
    %p832 = scmp.gt.s32.totalorder 0, 0
    // Predicated region
    $region30: #{tpu_custom_call.1} parent=1 // pred_check
      %p833 = pneg %p832
    $region31: #{tpu_custom_call.1} parent=1 // pred_check_branch
      %835 = sbr.rel (%p833) target = $region33
    $region32: #{tpu_custom_call.1} parent=1 // pred_region
      %v836 = vld [vmem:[#allocation8] sm:$0xff]
      %v837 = vld [vmem:[#allocation8 + $0x8] sm:$0xff]
      %v838 = vadd.f32 %v836, %v822
      %v839 = vadd.f32 %v837, %v824
      %840 = vst [vmem:[#allocation8] sm:$0xff] %v838
      %841 = vst [vmem:[#allocation8 + $0x8] sm:$0xff] %v839
    $region33: #{tpu_custom_call.1} parent=1 // pred_fallthru
      _
    // Predicated region
    $region34: #{tpu_custom_call.1} parent=1 // pred_check
      _
    $region35: #{tpu_custom_call.1} parent=1 // pred_check_branch
      %843 = sbr.rel (0) target = $region37
    $region36: #{tpu_custom_call.1} parent=1 // pred_region
      %845 = vsyncadd [#allocation4], 0
      %s846 = sshll.u32 [#allocation8], 4
      %s847 = int_to_ptr.vmem [resolvable:$true] %s846
      %s848 = sshll.u32 %s3, 4
      %s849 = int_to_ptr.hbm [resolvable:$true] %s848
      %854 = dma.vmem_to_hbm [thread:$0]  %s847, 256, %s849, [#allocation4], 128, 128, 8
    $region37: #{tpu_custom_call.1} parent=1 // pred_fallthru
      _
    // Predicated region
    $region38: #{tpu_custom_call.1} parent=1 // pred_check
      _
    $region39: #{tpu_custom_call.1} parent=1 // pred_check_branch
      %856 = sbr.rel (0) target = $region41
    $region40: #{tpu_custom_call.1} parent=1 // pred_region
      %858 = dma.done [#allocation4], 256
    $region41: #{tpu_custom_call.1} parent=1 // pred_fallthru
      _
    %859 = vsyncpa [#allocation3], 1
    %860 = vsyncpa [#allocation6], 1
    %861 = vsyncpa [#allocation4], 1

</llo_original>
